<compile_context>
chip_gen: v7x
topology: tpu7x:2x2x1
jax: 0.10.0
libtpu: 0.0.40
codegen_flags: <defaults>
</compile_context>

<pallas_src>
import functools

import jax
import jax.numpy as jnp
import numpy as np
from jax.experimental import pallas as pl
from jax.experimental.pallas import tpu as pltpu


def _f_dv_kernel(x_ref, y_ref, scale_ref, bias_ref, onehot_ref,
                 loss_ref, grad_ref, loss_acc, gpf_acc,
                 *, mask_rows, n_rows):
    b_idx = pl.program_id(1)

    @pl.when(b_idx == 0)
    def _init():
        loss_acc[...] = jnp.zeros_like(loss_acc)
        gpf_acc[...] = jnp.zeros_like(gpf_acc)

    x = x_ref[...]                                  # (tb, tf) f32
    y = y_ref[...].astype(jnp.float32)              # int8 labels -> f32 compute
    tb = x.shape[0]

    z = x * scale_ref[...] + bias_ref[...]          # logits, (tb, tf)
    # One stable exp(-|z|) reused for both the BCE loss and the sigmoid.
    e = jnp.exp(-jnp.abs(z))
    # Stable BCE:  max(z,0) - z*y + log1p(e)  ==  -(z*(y-1) + log_sigmoid(z))
    bce = jnp.maximum(z, 0.0) - z * y + jnp.log1p(e)
    inv_1pe = pl.reciprocal(1.0 + e, approx=True)   # EUP vrcp (separate slot)
    prob = jnp.where(z >= 0.0, inv_1pe, e * inv_1pe)
    diff = prob - y

    if mask_rows:
        # Only the last batch tile has padded rows; the compare is trivially
        # true elsewhere and this branch is only compiled when B % tb != 0.
        row = jax.lax.broadcasted_iota(jnp.int32, (tb, 1), 0) + b_idx * tb
        rmask = (row < n_rows).astype(jnp.float32)
        bce = bce * rmask
        diff = diff * rmask

    # Per-step partial reductions over the batch rows only (sublane reduce);
    # accumulators stay lane-wide so the cross-lane reduce happens once per
    # feature tile, at finalize.
    loss_acc[...] += jnp.sum(bce, axis=0, keepdims=True)            # (1, tf)
    gpf_acc[0:1, :] += jnp.sum(diff * x, axis=0, keepdims=True)     # scale grad row
    gpf_acc[1:2, :] += jnp.sum(diff, axis=0, keepdims=True)         # bias grad row

    @pl.when(b_idx == pl.num_programs(1) - 1)
    def _finalize():
        # Hoisted feature->class scatter-add via one-hot matmul on the MXU:
        # issued once per feature tile, not once per batch step.
        onehot = onehot_ref[...].astype(jnp.float32)                # (tf, Cpad)
        grad_ref[...] = jnp.dot(gpf_acc[...], onehot,
                                preferred_element_type=jnp.float32)  # (2, Cpad)
        loss_ref[...] = jnp.broadcast_to(
            jnp.sum(loss_acc[...], keepdims=True), loss_ref.shape)   # (8, 128)


def _round_up(n, m):
    return ((n + m - 1) // m) * m


def _pick_tile(n, pref, align):
    """Pick (tile, padded_n): tile is a multiple of `align`, <= max(pref, align),
    chosen to minimize padding (ties -> larger tile)."""
    if n <= pref:
        t = _round_up(max(n, 1), align)
        return t, t
    best = None
    t = (pref // align) * align
    while t >= align:
        p = _round_up(n, t)
        if best is None or p < best[1]:
            best = (t, p)
        t -= align
    return best


def _vmem_limit_bytes():
    """~75% of physical VMEM (so ~48 MiB on v7x, ~96 MiB on v5e/v6e)."""
    try:
        cap = int(pltpu.get_tpu_info().vmem_capacity_bytes)
        return min((cap * 3) // 4, 96 * 1024 * 1024)
    except Exception:
        return 48 * 1024 * 1024


def make_mapping_onehot(mapping, n_classes):
    """Feature->class one-hot scatter matrix (F, Cpad), bf16 (0/1 exact).

    Build this ONCE in the argmin driver and pass it to every
    sharpen_sigmoid_nll_f_dv call (it only depends on the static mapping)."""
    c_pad = _round_up(max(int(n_classes), 1), 128)
    return jax.nn.one_hot(jnp.asarray(mapping), c_pad, dtype=jnp.bfloat16)


@functools.partial(jax.jit,
                   static_argnames=("n_classes", "residual", "tile_b", "tile_f"))
def sharpen_sigmoid_nll_f_dv(x, y, v, mapping, *, n_classes, residual=0.0,
                             onehot=None, tile_b=None, tile_f=None):
    """Returns (loss, grad) matching SharpenSigmoidNLLRemapped.build_f_dv()(v)."""
    B, F = x.shape
    C = n_classes
    C_pad = _round_up(max(C, 1), 128)

    vmem_limit = _vmem_limit_bytes()
    budget = (vmem_limit * 6) // 10   # keep the steady-state footprint < ~60%

    # --- tile selection (footprint-aware, including the double-buffered one-hot)
    if tile_f is not None:
        assert tile_f % 128 == 0, "tile_f must be a multiple of 128"
        tf = tile_f
        F_pad = _round_up(F, tf)
    else:
        tf_pref = 2048
        while tf_pref > 128 and 4 * tf_pref * C_pad > budget // 2:
            tf_pref //= 2
        tf, F_pad = _pick_tile(F, tf_pref, 128)

    if tile_b is not None:
        assert tile_b % 32 == 0, "tile_b must be a multiple of 32 (int8 labels)"
        tb = tile_b
        B_pad = _round_up(B, tb)
    else:
        tb_pref = 512
        # per-step bytes ~ 10*tb*tf (x f32 + y int8, double-buffered)
        #                + 4*tf*Cpad (one-hot bf16, double-buffered) + slack
        while tb_pref > 32 and (10 * tb_pref * tf + 4 * tf * C_pad + 64 * tf) > budget:
            tb_pref //= 2
        tb, B_pad = _pick_tile(B, tb_pref, 32)

    nb = B_pad // tb
    nf = F_pad // tf
    mask_rows = (B_pad != B)

    # --- per-feature parameters and inputs (zero padding everywhere; padded
    #     feature columns get scale=bias=0 -> logits=0 -> exact log(2) loss
    #     correction below, and an all-zero one-hot row -> zero grad).
    v2 = v.reshape(-1, 2).astype(jnp.float32)
    scale = (v2[mapping, 0] + residual).reshape(1, F)
    bias = v2[mapping, 1].reshape(1, F)

    if onehot is None:
        onehot = jax.nn.one_hot(mapping, C_pad, dtype=jnp.bfloat16)   # (F, Cpad)
    assert onehot.shape == (F, C_pad)

    x_p = x.astype(jnp.float32)
    y_p = y.astype(jnp.int8)            # binary 0/1 labels: exact in int8
    onehot_p = onehot
    if B_pad != B or F_pad != F:
        x_p = jnp.pad(x_p, ((0, B_pad - B), (0, F_pad - F)))
        y_p = jnp.pad(y_p, ((0, B_pad - B), (0, F_pad - F)))
    if F_pad != F:
        scale = jnp.pad(scale, ((0, 0), (0, F_pad - F)))
        bias = jnp.pad(bias, ((0, 0), (0, F_pad - F)))
        onehot_p = jnp.pad(onehot, ((0, F_pad - F), (0, 0)))

    kernel = functools.partial(_f_dv_kernel, mask_rows=mask_rows, n_rows=B)

    cost = pl.CostEstimate(
        flops=int(15 * B_pad * F_pad + 2 * 2 * F_pad * C_pad),
        transcendentals=int(3 * B_pad * F_pad),
        bytes_accessed=int(5 * B_pad * F_pad + 2 * F_pad * C_pad + 8 * F_pad
                           + 4 * nf * (8 * 128 + 2 * C_pad)),
    )

    loss_parts, grad_parts = pl.pallas_call(
        kernel,
        grid_spec=pltpu.PrefetchScalarGridSpec(
            num_scalar_prefetch=0,
            grid=(nf, nb),                                     # f outer, b inner
            in_specs=[
                pl.BlockSpec((tb, tf), lambda f, b: (b, f)),       # x (f32)
                pl.BlockSpec((tb, tf), lambda f, b: (b, f)),       # y (int8)
                pl.BlockSpec((1, tf), lambda f, b: (0, f)),        # scale
                pl.BlockSpec((1, tf), lambda f, b: (0, f)),        # bias
                pl.BlockSpec((tf, C_pad), lambda f, b: (f, 0)),    # one-hot (bf16)
            ],
            out_specs=(
                pl.BlockSpec((None, 8, 128), lambda f, b: (f, 0, 0)),    # loss partials
                pl.BlockSpec((None, 2, C_pad), lambda f, b: (f, 0, 0)),  # grad partials
            ),
            scratch_shapes=[
                pltpu.VMEM((1, tf), jnp.float32),   # loss accumulator (lane-wide)
                pltpu.VMEM((2, tf), jnp.float32),   # (diff*x, diff) row accumulators
            ],
        ),
        out_shape=(
            jax.ShapeDtypeStruct((nf, 8, 128), jnp.float32),
            jax.ShapeDtypeStruct((nf, 2, C_pad), jnp.float32),
        ),
        compiler_params=pltpu.CompilerParams(
            # Feature axis "parallel": megacore-safe (per-tile partial outputs),
            # lets v7x use both TensorCores.  Batch axis is the reduction.
            dimension_semantics=("parallel", "arbitrary"),
            vmem_limit_bytes=vmem_limit,
        ),
        cost_estimate=cost,
    )(x_p, y_p, scale, bias, onehot_p)

    inv_div = 1.0 / float(B * F)
    # Padded feature columns contribute exactly log(2) per (real row, pad col).
    corr = float(np.log(2.0)) * B * (F_pad - F)
    loss = (jnp.sum(loss_parts[:, 0, 0]) - corr) * inv_div

    grad_2c = jnp.sum(grad_parts, axis=0) * inv_div        # (2, Cpad)
    # (2, Cpad) -> (C, 2) -> flat [scale_0, bias_0, scale_1, bias_1, ...]
    grad = grad_2c[:, :C].T.reshape(-1)
    return loss, grad


def _reference_numpy(x, y, v, mapping, n_classes, residual=0.0):
    x = np.asarray(x, np.float64)
    y = np.asarray(y, np.float64)
    v = np.asarray(v, np.float64).reshape(-1, 2)
    m = np.asarray(mapping)
    scale = v[m, 0] + residual
    bias = v[m, 1]
    logits = x * scale + bias
    log_sig = -(np.log1p(np.exp(-np.abs(logits))) + np.maximum(-logits, 0.0))
    loss = -(logits * (y - 1.0) + log_sig).mean()
    prob = 1.0 / (1.0 + np.exp(-logits))
    diff = prob - y
    div = x.shape[0] * x.shape[1]
    grad_pf = np.stack([diff * x, diff], -1).sum(0) / div      # (F, 2)
    unmapped = np.zeros((n_classes, 2))
    np.add.at(unmapped, m, grad_pf)
    return loss, unmapped.ravel()


if __name__ == "__main__":
    key = jax.random.PRNGKey(0)
    k1, k2, k3 = jax.random.split(key, 3)

    # Small, deliberately non-aligned shapes: exercises batch-row masking,
    # feature-column padding, a multi-tile (f x b) grid with resident
    # accumulators, and the per-feature-tile partial outputs.
    B, F, C = 40, 200, 7
    mapping_np = np.array([i % C for i in range(F)], dtype=np.int32)
    mapping = jnp.asarray(mapping_np)

    x = jax.random.normal(k1, (B, F), dtype=jnp.float32)
    # Labels correlated with x so the gradients are not vanishingly small.
    y = (x + 0.5 * jax.random.normal(k2, (B, F)) > 0.0).astype(jnp.float32)
    v = 0.3 * jax.random.normal(k3, (2 * C,), dtype=jnp.float32)

    # Hoisted out of the per-iteration call (built once per argmin loop).
    onehot = make_mapping_onehot(mapping, C)

    # Case 1: explicit small tiles -> 2x2 grid, padded rows + padded columns.
    loss, grad = sharpen_sigmoid_nll_f_dv(
        x, y, v, mapping, n_classes=C, residual=0.0, onehot=onehot,
        tile_b=32, tile_f=128)
    loss, grad = jax.block_until_ready((loss, grad))
    ref_loss, ref_grad = _reference_numpy(x, y, v, mapping_np, C, 0.0)
    assert np.allclose(float(loss), ref_loss, atol=1e-4, rtol=1e-4), (
        float(loss), ref_loss)
    # Grad path goes through the EUP approximate reciprocal (pl.reciprocal
    # approx=True) for sigmoid, so allow a slightly looser tolerance.
    assert np.allclose(np.asarray(grad), ref_grad, atol=1e-3, rtol=1e-2), (
        np.asarray(grad), ref_grad)

    # Case 2: auto tile selection + nonzero residual (residual=True semantics).
    loss2, grad2 = sharpen_sigmoid_nll_f_dv(
        x, y, v, mapping, n_classes=C, residual=1.0, onehot=onehot)
    loss2, grad2 = jax.block_until_ready((loss2, grad2))
    ref_loss2, ref_grad2 = _reference_numpy(x, y, v, mapping_np, C, 1.0)
    assert np.allclose(float(loss2), ref_loss2, atol=1e-4, rtol=1e-4), (
        float(loss2), ref_loss2)
    assert np.allclose(np.asarray(grad2), ref_grad2, atol=1e-3, rtol=1e-2), (
        np.asarray(grad2), ref_grad2)

    print("KERNEL_OK")
</pallas_src>

<mosaic_0001>
module attributes {stable_mosaic.version = 11 : i64} {
  func.func @_f_dv_kernel(%arg0: i32, %arg1: i32, %arg2: memref<32x128xf32, #tpu.memory_space<vmem>>, %arg3: memref<32x128xi8, #tpu.memory_space<vmem>>, %arg4: memref<1x128xf32, #tpu.memory_space<vmem>>, %arg5: memref<1x128xf32, #tpu.memory_space<vmem>>, %arg6: memref<128x128xbf16, #tpu.memory_space<vmem>>, %arg7: memref<1x8x128xf32, #tpu.memory_space<vmem>>, %arg8: memref<1x2x128xf32, #tpu.memory_space<vmem>>, %arg9: memref<1x128xf32, #tpu.memory_space<vmem>>, %arg10: memref<2x128xf32, #tpu.memory_space<vmem>>) attributes {dimension_semantics = [#tpu.dimension_semantics<parallel>, #tpu.dimension_semantics<arbitrary>], iteration_bounds = array<i64: 2, 2>, scalar_prefetch = 0 : i64, scratch_operands = 2 : i64, tpu.core_type = #tpu.core_type<tc>, window_params = [{transform_indices = @transform_0, window_bounds = array<i64: 32, 128>}, {transform_indices = @transform_1, window_bounds = array<i64: 32, 128>}, {transform_indices = @transform_2, window_bounds = array<i64: 1, 128>}, {transform_indices = @transform_3, window_bounds = array<i64: 1, 128>}, {transform_indices = @transform_4, window_bounds = array<i64: 128, 128>}, {transform_indices = @transform_5, window_bounds = array<i64: 1, 8, 128>}, {transform_indices = @transform_6, window_bounds = array<i64: 1, 2, 128>}]} {
    %c0_i32 = arith.constant 0 : i32
    %0 = arith.cmpi eq, %arg1, %c0_i32 : i32
    %1 = arith.extui %0 : i1 to i32
    %c0_i32_0 = arith.constant 0 : i32
    %2 = arith.cmpi ne, %1, %c0_i32_0 : i32
    scf.if %2 {
      %cst_26 = arith.constant 0.000000e+00 : f32
      %61 = vector.broadcast %cst_26 : f32 to vector<1x128xf32>
      %c0_27 = arith.constant 0 : index
      %c0_28 = arith.constant 0 : index
      %62 = vector.load %arg9[%c0_27, %c0_28] : memref<1x128xf32, #tpu.memory_space<vmem>>, vector<1x128xf32>
      tpu.vector_store %arg9[%c0_27, %c0_28], %61 {strides = array<i32>} : memref<1x128xf32, #tpu.memory_space<vmem>>, vector<1x128xf32>,
      %cst_29 = arith.constant 0.000000e+00 : f32
      %63 = vector.broadcast %cst_29 : f32 to vector<2x128xf32>
      %c0_30 = arith.constant 0 : index
      %c0_31 = arith.constant 0 : index
      %64 = vector.load %arg10[%c0_30, %c0_31] : memref<2x128xf32, #tpu.memory_space<vmem>>, vector<2x128xf32>
      tpu.vector_store %arg10[%c0_30, %c0_31], %63 {strides = array<i32>} : memref<2x128xf32, #tpu.memory_space<vmem>>, vector<2x128xf32>,
    } else {
    }
    %c0 = arith.constant 0 : index
    %c0_1 = arith.constant 0 : index
    %3 = vector.load %arg2[%c0, %c0_1] : memref<32x128xf32, #tpu.memory_space<vmem>>, vector<32x128xf32>
    %c0_2 = arith.constant 0 : index
    %c0_3 = arith.constant 0 : index
    %4 = vector.load %arg3[%c0_2, %c0_3] : memref<32x128xi8, #tpu.memory_space<vmem>>, vector<32x128xi8>
    %5 = arith.sitofp %4 : vector<32x128xi8> to vector<32x128xf32>
    %c0_4 = arith.constant 0 : index
    %c0_5 = arith.constant 0 : index
    %6 = vector.load %arg4[%c0_4, %c0_5] : memref<1x128xf32, #tpu.memory_space<vmem>>, vector<1x128xf32>
    %7 = vector.broadcast %6 : vector<1x128xf32> to vector<32x128xf32>
    %8 = arith.mulf %3, %7 : vector<32x128xf32>
    %c0_6 = arith.constant 0 : index
    %c0_7 = arith.constant 0 : index
    %9 = vector.load %arg5[%c0_6, %c0_7] : memref<1x128xf32, #tpu.memory_space<vmem>>, vector<1x128xf32>
    %10 = vector.broadcast %9 : vector<1x128xf32> to vector<32x128xf32>
    %11 = arith.addf %8, %10 : vector<32x128xf32>
    %12 = math.absf %11 : vector<32x128xf32>
    %cst = arith.constant 0.000000e+00 : f32
    %13 = vector.broadcast %cst : f32 to vector<32x128xf32>
    %14 = arith.subf %13, %12 : vector<32x128xf32>
    %15 = math.exp %14 : vector<32x128xf32>
    %cst_8 = arith.constant 0.000000e+00 : f32
    %16 = vector.broadcast %cst_8 : f32 to vector<32x128xf32>
    %17 = arith.maximumf %11, %16 : vector<32x128xf32>
    %18 = arith.mulf %11, %5 : vector<32x128xf32>
    %19 = arith.subf %17, %18 : vector<32x128xf32>
    %20 = math.log1p %15 : vector<32x128xf32>
    %21 = arith.addf %19, %20 : vector<32x128xf32>
    %cst_9 = arith.constant 1.000000e+00 : f32
    %22 = vector.broadcast %cst_9 : f32 to vector<32x128xf32>
    %23 = arith.addf %22, %15 : vector<32x128xf32>
    %24 = tpu.reciprocal %23 {approx = true} : vector<32x128xf32> -> vector<32x128xf32>
    %cst_10 = arith.constant 0.000000e+00 : f32
    %25 = vector.broadcast %cst_10 : f32 to vector<32x128xf32>
    %26 = arith.cmpf oge, %11, %25 : vector<32x128xf32>
    %27 = arith.mulf %15, %24 : vector<32x128xf32>
    %28 = arith.select %26, %24, %27 : vector<32x128xi1>, vector<32x128xf32>
    %29 = arith.subf %28, %5 : vector<32x128xf32>
    %30 = tpu.iota {dimensions = array<i32: 0>} : vector<32x1xi32>
    %c32_i32 = arith.constant 32 : i32
    %31 = arith.muli %arg1, %c32_i32 : i32
    %32 = vector.broadcast %31 : i32 to vector<32x1xi32>
    %33 = arith.addi %30, %32 : vector<32x1xi32>
    %c40_i32 = arith.constant 40 : i32
    %34 = vector.broadcast %c40_i32 : i32 to vector<32x1xi32>
    %35 = arith.cmpi slt, %33, %34 : vector<32x1xi32>
    %36 = arith.extui %35 : vector<32x1xi1> to vector<32x1xi32>
    %37 = arith.sitofp %36 : vector<32x1xi32> to vector<32x1xf32>
    %38 = vector.broadcast %37 : vector<32x1xf32> to vector<32x128xf32>
    %39 = arith.mulf %21, %38 : vector<32x128xf32>
    %40 = vector.broadcast %37 : vector<32x1xf32> to vector<32x128xf32>
    %41 = arith.mulf %29, %40 : vector<32x128xf32>
    %c0_11 = arith.constant 0 : index
    %c0_12 = arith.constant 0 : index
    %42 = vector.load %arg9[%c0_11, %c0_12] : memref<1x128xf32, #tpu.memory_space<vmem>>, vector<1x128xf32>
    %cst_13 = arith.constant dense<0.000000e+00> : vector<128xf32>
    %43 = vector.multi_reduction <add>, %39, %cst_13 [0] : vector<32x128xf32> to vector<128xf32>
    %44 = vector.shape_cast %43 : vector<128xf32> to vector<1x128xf32>
    %45 = arith.addf %42, %44 : vector<1x128xf32>
    %c0_14 = arith.constant 0 : index
    %c0_15 = arith.constant 0 : index
    %46 = vector.load %arg9[%c0_14, %c0_15] : memref<1x128xf32, #tpu.memory_space<vmem>>, vector<1x128xf32>
    tpu.vector_store %arg9[%c0_14, %c0_15], %45 {strides = array<i32>} : memref<1x128xf32, #tpu.memory_space<vmem>>, vector<1x128xf32>,
    %c0_16 = arith.constant 0 : index
    %c0_17 = arith.constant 0 : index
    %47 = vector.load %arg10[%c0_16, %c0_17] : memref<2x128xf32, #tpu.memory_space<vmem>>, vector<1x128xf32>
    %48 = arith.mulf %41, %3 : vector<32x128xf32>
    %cst_18 = arith.constant dense<0.000000e+00> : vector<128xf32>
    %49 = vector.multi_reduction <add>, %48, %cst_18 [0] : vector<32x128xf32> to vector<128xf32>
    %50 = vector.shape_cast %49 : vector<128xf32> to vector<1x128xf32>
    %51 = arith.addf %47, %50 : vector<1x128xf32>
    %c0_19 = arith.constant 0 : index
    %c0_20 = arith.constant 0 : index
    %52 = vector.load %arg10[%c0_19, %c0_20] : memref<2x128xf32, #tpu.memory_space<vmem>>, vector<1x128xf32>
    tpu.vector_store %arg10[%c0_19, %c0_20], %51 {strides = array<i32>} : memref<2x128xf32, #tpu.memory_space<vmem>>, vector<1x128xf32>,
    %c1 = arith.constant 1 : index
    %c0_21 = arith.constant 0 : index
    %53 = vector.load %arg10[%c1, %c0_21] : memref<2x128xf32, #tpu.memory_space<vmem>>, vector<1x128xf32>
    %cst_22 = arith.constant dense<0.000000e+00> : vector<128xf32>
    %54 = vector.multi_reduction <add>, %41, %cst_22 [0] : vector<32x128xf32> to vector<128xf32>
    %55 = vector.shape_cast %54 : vector<128xf32> to vector<1x128xf32>
    %56 = arith.addf %53, %55 : vector<1x128xf32>
    %c1_23 = arith.constant 1 : index
    %c0_24 = arith.constant 0 : index
    %57 = vector.load %arg10[%c1_23, %c0_24] : memref<2x128xf32, #tpu.memory_space<vmem>>, vector<1x128xf32>
    tpu.vector_store %arg10[%c1_23, %c0_24], %56 {strides = array<i32>} : memref<2x128xf32, #tpu.memory_space<vmem>>, vector<1x128xf32>,
    %c1_i32 = arith.constant 1 : i32
    %58 = arith.cmpi eq, %arg1, %c1_i32 : i32
    %59 = arith.extui %58 : i1 to i32
    %c0_i32_25 = arith.constant 0 : i32
    %60 = arith.cmpi ne, %59, %c0_i32_25 : i32
    scf.if %60 {
      %c0_26 = arith.constant 0 : index
      %c0_27 = arith.constant 0 : index
      %61 = vector.load %arg6[%c0_26, %c0_27] : memref<128x128xbf16, #tpu.memory_space<vmem>>, vector<128x128xbf16>
      %62 = arith.extf %61 : vector<128x128xbf16> to vector<128x128xf32>
      %c0_28 = arith.constant 0 : index
      %c0_29 = arith.constant 0 : index
      %63 = vector.load %arg10[%c0_28, %c0_29] : memref<2x128xf32, #tpu.memory_space<vmem>>, vector<2x128xf32>
      %cst_30 = arith.constant dense<0.000000e+00> : vector<2x128xf32>
      %64 = tpu.matmul %63, %62, %cst_30 {dimension_numbers = #tpu.dot_dimension_numbers<[1], [0], [0], [1], [0, 0, 1, 1], [], []>} : vector<2x128xf32>, vector<128x128xf32>, vector<2x128xf32> -> vector<2x128xf32>
      %c0_31 = arith.constant 0 : index
      %c0_32 = arith.constant 0 : index
      %c0_33 = arith.constant 0 : index
      %65 = vector.load %arg8[%c0_31, %c0_32, %c0_33] : memref<1x2x128xf32, #tpu.memory_space<vmem>>, vector<1x2x128xf32>
      %66 = vector.shape_cast %65 : vector<1x2x128xf32> to vector<2x128xf32>
      %67 = vector.shape_cast %64 : vector<2x128xf32> to vector<1x2x128xf32>
      tpu.vector_store %arg8[%c0_31, %c0_32, %c0_33], %67 {strides = array<i32>} : memref<1x2x128xf32, #tpu.memory_space<vmem>>, vector<1x2x128xf32>,
      %c0_34 = arith.constant 0 : index
      %c0_35 = arith.constant 0 : index
      %68 = vector.load %arg9[%c0_34, %c0_35] : memref<1x128xf32, #tpu.memory_space<vmem>>, vector<1x128xf32>
      %69 = vector.shape_cast %68 : vector<1x128xf32> to vector<1x1x128xf32>
      %cst_36 = arith.constant dense<0.000000e+00> : vector<1xf32>
      %70 = vector.multi_reduction <add>, %69, %cst_36 [1, 2] : vector<1x1x128xf32> to vector<1xf32>
      %71 = vector.shape_cast %70 : vector<1xf32> to vector<1x1x1xf32>
      %72 = vector.extract %71[0, 0, 0] : f32 from vector<1x1x1xf32>
      %73 = vector.broadcast %72 : f32 to vector<1x1xf32>
      %74 = vector.shape_cast %73 : vector<1x1xf32> to vector<1x1xf32>
      %75 = vector.broadcast %74 : vector<1x1xf32> to vector<8x128xf32>
      %c0_37 = arith.constant 0 : index
      %c0_38 = arith.constant 0 : index
      %c0_39 = arith.constant 0 : index
      %76 = vector.load %arg7[%c0_37, %c0_38, %c0_39] : memref<1x8x128xf32, #tpu.memory_space<vmem>>, vector<1x8x128xf32>
      %77 = vector.shape_cast %76 : vector<1x8x128xf32> to vector<8x128xf32>
      %78 = vector.shape_cast %75 : vector<8x128xf32> to vector<1x8x128xf32>
      tpu.vector_store %arg7[%c0_37, %c0_38, %c0_39], %78 {strides = array<i32>} : memref<1x8x128xf32, #tpu.memory_space<vmem>>, vector<1x8x128xf32>,
    } else {
    }
    return
  }
  func.func @transform_0(%arg0: i32, %arg1: i32) -> (i32, i32) {
    %c0_i32 = arith.constant 0 : i32
    return %arg1, %arg0 : i32, i32
  }
  func.func @transform_1(%arg0: i32, %arg1: i32) -> (i32, i32) {
    %c0_i32 = arith.constant 0 : i32
    return %arg1, %arg0 : i32, i32
  }
  func.func @transform_2(%arg0: i32, %arg1: i32) -> (i32, i32) {
    %c0_i32 = arith.constant 0 : i32
    %c0_i32_0 = arith.constant 0 : i32
    return %c0_i32, %arg0 : i32, i32
  }
  func.func @transform_3(%arg0: i32, %arg1: i32) -> (i32, i32) {
    %c0_i32 = arith.constant 0 : i32
    %c0_i32_0 = arith.constant 0 : i32
    return %c0_i32, %arg0 : i32, i32
  }
  func.func @transform_4(%arg0: i32, %arg1: i32) -> (i32, i32) {
    %c0_i32 = arith.constant 0 : i32
    %c0_i32_0 = arith.constant 0 : i32
    return %arg0, %c0_i32 : i32, i32
  }
  func.func @transform_5(%arg0: i32, %arg1: i32) -> (i32, i32, i32) {
    %c0_i32 = arith.constant 0 : i32
    %c0_i32_0 = arith.constant 0 : i32
    %c0_i32_1 = arith.constant 0 : i32
    return %arg0, %c0_i32, %c0_i32_0 : i32, i32, i32
  }
  func.func @transform_6(%arg0: i32, %arg1: i32) -> (i32, i32, i32) {
    %c0_i32 = arith.constant 0 : i32
    %c0_i32_0 = arith.constant 0 : i32
    %c0_i32_1 = arith.constant 0 : i32
    return %arg0, %c0_i32, %c0_i32_0 : i32, i32, i32
  }
}

</mosaic_0001>

<llo_original>
// kernel: sharpen_sigmoid_nll_f_dv.1
$region0: #{sharpen_sigmoid_nll_f_dv.1}
  #allocation0 [shape = 'u32[]', space=smem, size = 0x4, offset = 0x4, fixed_abs, tag = 'smem constant byte address 0x4 - core index']
  #allocation1 [shape = 'u32[144,128]{1,0:T(1,128)}', space=vmem, size = 0x12000, scoped, tag = 'internal scratch']
  #allocation2 [shape = 'f32[1,128]{1,0:T(1,128)}', space=vmem, size = 0x200, scoped, tag = 'scratch operand']
  #allocation3 [shape = 'f32[2,128]{1,0:T(2,128)}', space=vmem, size = 0x400, scoped, tag = 'scratch operand']
  %s0 = inlined_call_operand.vmem [shape: f32[64,256], index: 0, kind: input, shape index: {}]
  %s1 = inlined_call_operand.vmem [shape: s8[64,256], index: 1, kind: input, shape index: {}]
  %s2 = inlined_call_operand.vmem [shape: f32[1,256], index: 2, kind: input, shape index: {}]
  %s3 = inlined_call_operand.vmem [shape: f32[1,256], index: 3, kind: input, shape index: {}]
  %s4 = inlined_call_operand.vmem [shape: bf16[256,128], index: 4, kind: input, shape index: {}]
  %s5 = inlined_call_operand.vmem [shape: f32[2,8,128], index: 5, kind: output, shape index: {0}]
  %s6 = inlined_call_operand.vmem [shape: f32[2,2,128], index: 6, kind: output, shape index: {1}]
  %7 = xla_tuple %s5, %s6
  %s8 = sld [smem:[#allocation0]]
  $region107: #{sharpen_sigmoid_nll_f_dv.1} parent=0
    _
  %s10 = ssub.s32 1, %s8
  %s11 = scalar_select 0, %s10, %s8
  $region1: #{sharpen_sigmoid_nll_f_dv.1} parent=0
    #allocation4 [shape = 'u8[32768]{0}', space=vmem, size = 0x8000, scoped, tag = 'input window, operand 0']
    loop: start=0, step=1, limit=6
    $region2: #{sharpen_sigmoid_nll_f_dv.1} parent=1 // loop_pre_header
      _
    $region3: #{sharpen_sigmoid_nll_f_dv.1} parent=1 // loop_header
      %s13 = sphi 0, %s17
      %p14 = scmp.ge.s32.totalorder %s13, 6
      %s20 = sphi 0, %s32
      %s21 = sphi 0, %s28
      %s22 = sphi 0, %s20
      %s23 = sphi 0, %s21
      %s24 = sphi 0, %s22
      %s25 = sphi 0, %s23
      %s37 = sphi 0, %s39
      %s40 = sphi 0, %s37
      %s41 = sphi 0, %s40
      %s57 = sphi 0, %s41
      %s65 = sphi 0, %s67
      %s68 = sphi 0, %s65
      %s69 = sphi 0, %s68
      %s85 = sphi 0, %s69
      %s91 = sphi 0, %s93
      %s94 = sphi 0, %s91
      %s95 = sphi 0, %s94
      %s111 = sphi 0, %s95
      %s117 = sphi 0, %s119
      %s120 = sphi 0, %s117
      %s121 = sphi 0, %s120
      %s137 = sphi 0, %s121
      %s143 = sphi 0, %s145
      %s146 = sphi 0, %s143
      %s147 = sphi 0, %s146
      %s163 = sphi 0, %s147
      %s169 = sphi 0, %s171
      %s172 = sphi 0, %s169
      %s173 = sphi 0, %s172
      %s189 = sphi 0, %s173
      %s195 = sphi 0, %s197
      %s198 = sphi 0, %s195
      %s199 = sphi 0, %s198
      %s215 = sphi 0, %s199
    $region4: #{sharpen_sigmoid_nll_f_dv.1} parent=1 // loop_header_branch
      %16 = sbr.rel (%p14) target = $region8
    $region5: #{sharpen_sigmoid_nll_f_dv.1} parent=1 // loop_body
      %s18 = ssub.s32 %s13, 1
      %s19 = ssub.s32 %s13, 2
      %s26 = sadd.s32 1, %s21
      %p27 = scmp.ge.s32.totalorder %s26, 2
      %s28 = scalar_select %p27, 0, %s26
      %s29 = sadd.s32 1, %s20
      %s30 = scalar_select %p27, %s29, %s20
      %p31 = scmp.ge.s32.totalorder %s30, 2
      %s32 = scalar_select %p31, 0, %s30
      %s33 = ssub.s32 %s21, %s28
      %s34 = ssub.s32 %s20, %s32
      %s35 = sor.u32 %s33, %s34
      %p36 = scmp.eq.s32.totalorder %s35, 0
      %s38 = sadd.s32 %s37, 1
      %s39 = scalar_select %p36, %s37, %s38
      %p42 = pneg %p36
      %p43 = scmp.eq.s32.totalorder %s13, 3
      %p44 = por %p42, %p43
      %p45 = scmp.ne.s32.totalorder %s37, %s40
      %p46 = scmp.eq.s32.totalorder %s13, 0
      %p47 = por %p45, %p46
      %p48 = scmp.ne.s32.totalorder %s37, %s40
      %p49 = scmp.eq.s32.totalorder %s18, 3
      %p50 = por %p48, %p49
      %p51 = scmp.ne.s32.totalorder %s40, %s41
      %p52 = scmp.eq.s32.totalorder %s18, 0
      %p53 = por %p51, %p52
      %p54 = scmp.ne.s32.totalorder %s40, %s41
      %p55 = scmp.eq.s32.totalorder %s19, 3
      %p56 = por %p54, %p55
      %p58 = scmp.ne.s32.totalorder %s41, %s57
      %p59 = scmp.eq.s32.totalorder %s19, 0
      %p60 = por %p58, %p59
      %s61 = ssub.s32 %s21, %s28
      %s62 = ssub.s32 %s20, %s32
      %s63 = sor.u32 %s61, %s62
      %p64 = scmp.eq.s32.totalorder %s63, 0
      %s66 = sadd.s32 %s65, 1
      %s67 = scalar_select %p64, %s65, %s66
      %p70 = pneg %p64
      %p71 = scmp.eq.s32.totalorder %s13, 3
      %p72 = por %p70, %p71
      %p73 = scmp.ne.s32.totalorder %s65, %s68
      %p74 = scmp.eq.s32.totalorder %s13, 0
      %p75 = por %p73, %p74
      %p76 = scmp.ne.s32.totalorder %s65, %s68
      %p77 = scmp.eq.s32.totalorder %s18, 3
      %p78 = por %p76, %p77
      %p79 = scmp.ne.s32.totalorder %s68, %s69
      %p80 = scmp.eq.s32.totalorder %s18, 0
      %p81 = por %p79, %p80
      %p82 = scmp.ne.s32.totalorder %s68, %s69
      %p83 = scmp.eq.s32.totalorder %s19, 3
      %p84 = por %p82, %p83
      %p86 = scmp.ne.s32.totalorder %s69, %s85
      %p87 = scmp.eq.s32.totalorder %s19, 0
      %p88 = por %p86, %p87
      %s89 = ssub.s32 %s20, %s32
      %p90 = scmp.eq.s32.totalorder %s89, 0
      %s92 = sadd.s32 %s91, 1
      %s93 = scalar_select %p90, %s91, %s92
      %p96 = pneg %p90
      %p97 = scmp.eq.s32.totalorder %s13, 3
      %p98 = por %p96, %p97
      %p99 = scmp.ne.s32.totalorder %s91, %s94
      %p100 = scmp.eq.s32.totalorder %s13, 0
      %p101 = por %p99, %p100
      %p102 = scmp.ne.s32.totalorder %s91, %s94
      %p103 = scmp.eq.s32.totalorder %s18, 3
      %p104 = por %p102, %p103
      %p105 = scmp.ne.s32.totalorder %s94, %s95
      %p106 = scmp.eq.s32.totalorder %s18, 0
      %p107 = por %p105, %p106
      %p108 = scmp.ne.s32.totalorder %s94, %s95
      %p109 = scmp.eq.s32.totalorder %s19, 3
      %p110 = por %p108, %p109
      %p112 = scmp.ne.s32.totalorder %s95, %s111
      %p113 = scmp.eq.s32.totalorder %s19, 0
      %p114 = por %p112, %p113
      %s115 = ssub.s32 %s20, %s32
      %p116 = scmp.eq.s32.totalorder %s115, 0
      %s118 = sadd.s32 %s117, 1
      %s119 = scalar_select %p116, %s117, %s118
      %p122 = pneg %p116
      %p123 = scmp.eq.s32.totalorder %s13, 3
      %p124 = por %p122, %p123
      %p125 = scmp.ne.s32.totalorder %s117, %s120
      %p126 = scmp.eq.s32.totalorder %s13, 0
      %p127 = por %p125, %p126
      %p128 = scmp.ne.s32.totalorder %s117, %s120
      %p129 = scmp.eq.s32.totalorder %s18, 3
      %p130 = por %p128, %p129
      %p131 = scmp.ne.s32.totalorder %s120, %s121
      %p132 = scmp.eq.s32.totalorder %s18, 0
      %p133 = por %p131, %p132
      %p134 = scmp.ne.s32.totalorder %s120, %s121
      %p135 = scmp.eq.s32.totalorder %s19, 3
      %p136 = por %p134, %p135
      %p138 = scmp.ne.s32.totalorder %s121, %s137
      %p139 = scmp.eq.s32.totalorder %s19, 0
      %p140 = por %p138, %p139
      %s141 = ssub.s32 %s20, %s32
      %p142 = scmp.eq.s32.totalorder %s141, 0
      %s144 = sadd.s32 %s143, 1
      %s145 = scalar_select %p142, %s143, %s144
      %p148 = pneg %p142
      %p149 = scmp.eq.s32.totalorder %s13, 3
      %p150 = por %p148, %p149
      %p151 = scmp.ne.s32.totalorder %s143, %s146
      %p152 = scmp.eq.s32.totalorder %s13, 0
      %p153 = por %p151, %p152
      %p154 = scmp.ne.s32.totalorder %s143, %s146
      %p155 = scmp.eq.s32.totalorder %s18, 3
      %p156 = por %p154, %p155
      %p157 = scmp.ne.s32.totalorder %s146, %s147
      %p158 = scmp.eq.s32.totalorder %s18, 0
      %p159 = por %p157, %p158
      %p160 = scmp.ne.s32.totalorder %s146, %s147
      %p161 = scmp.eq.s32.totalorder %s19, 3
      %p162 = por %p160, %p161
      %p164 = scmp.ne.s32.totalorder %s147, %s163
      %p165 = scmp.eq.s32.totalorder %s19, 0
      %p166 = por %p164, %p165
      %s167 = ssub.s32 %s20, %s32
      %p168 = scmp.eq.s32.totalorder %s167, 0
      %s170 = sadd.s32 %s169, 1
      %s171 = scalar_select %p168, %s169, %s170
      %p174 = pneg %p168
      %p175 = scmp.eq.s32.totalorder %s13, 3
      %p176 = por %p174, %p175
      %p177 = scmp.ne.s32.totalorder %s169, %s172
      %p178 = scmp.eq.s32.totalorder %s13, 0
      %p179 = por %p177, %p178
      %p180 = scmp.ne.s32.totalorder %s169, %s172
      %p181 = scmp.eq.s32.totalorder %s18, 3
      %p182 = por %p180, %p181
      %p183 = scmp.ne.s32.totalorder %s172, %s173
      %p184 = scmp.eq.s32.totalorder %s18, 0
      %p185 = por %p183, %p184
      %p186 = scmp.ne.s32.totalorder %s172, %s173
      %p187 = scmp.eq.s32.totalorder %s19, 3
      %p188 = por %p186, %p187
      %p190 = scmp.ne.s32.totalorder %s173, %s189
      %p191 = scmp.eq.s32.totalorder %s19, 0
      %p192 = por %p190, %p191
      %s193 = ssub.s32 %s20, %s32
      %p194 = scmp.eq.s32.totalorder %s193, 0
      %s196 = sadd.s32 %s195, 1
      %s197 = scalar_select %p194, %s195, %s196
      %p200 = pneg %p194
      %p201 = scmp.eq.s32.totalorder %s13, 3
      %p202 = por %p200, %p201
      %p203 = scmp.ne.s32.totalorder %s195, %s198
      %p204 = scmp.eq.s32.totalorder %s13, 0
      %p205 = por %p203, %p204
      %p206 = scmp.ne.s32.totalorder %s195, %s198
      %p207 = scmp.eq.s32.totalorder %s18, 3
      %p208 = por %p206, %p207
      %p209 = scmp.ne.s32.totalorder %s198, %s199
      %p210 = scmp.eq.s32.totalorder %s18, 0
      %p211 = por %p209, %p210
      %p212 = scmp.ne.s32.totalorder %s198, %s199
      %p213 = scmp.eq.s32.totalorder %s19, 3
      %p214 = por %p212, %p213
      %p216 = scmp.ne.s32.totalorder %s199, %s215
      %p217 = scmp.eq.s32.totalorder %s19, 0
      %p218 = por %p216, %p217
      %p219 = scmp.le.s32.totalorder 1, %s13
      %p220 = scmp.lt.s32.totalorder %s13, 5
      %p221 = pnand %p219, %p220
      %p222 = pneg %p221
      // Predicated region
      $region9: #{sharpen_sigmoid_nll_f_dv.1} parent=5 // pred_check
        _
      $region10: #{sharpen_sigmoid_nll_f_dv.1} parent=5 // pred_check_branch
        %224 = sbr.rel (%p221) target = $region12
      $region11: #{sharpen_sigmoid_nll_f_dv.1} parent=5 // pred_region
        %s225 = ssub.s32 %s13, 1
      $region12: #{sharpen_sigmoid_nll_f_dv.1} parent=5 // pred_fallthru
        _
      %p226 = scmp.lt.s32.totalorder %s13, 4
      // Predicated region
      $region13: #{sharpen_sigmoid_nll_f_dv.1} parent=5 // pred_check
        %p227 = pneg %p226
      $region14: #{sharpen_sigmoid_nll_f_dv.1} parent=5 // pred_check_branch
        %229 = sbr.rel (%p227) target = $region16
      $region15: #{sharpen_sigmoid_nll_f_dv.1} parent=5 // pred_region
        // Predicated region
        $region17: #{sharpen_sigmoid_nll_f_dv.1} parent=15 // pred_check
          %p230 = pneg %p47
        $region18: #{sharpen_sigmoid_nll_f_dv.1} parent=15 // pred_check_branch
          %232 = sbr.rel (%p230) target = $region20
        $region19: #{sharpen_sigmoid_nll_f_dv.1} parent=15 // pred_region
          %s233 = sand.u32 %s37, 1
          %s234 = sand.u32 %s37, 1
          %s235 = smul.addr %s234, 32
          %s236 = scalar_lea.vmem [#allocation4], %s235
          %s237 = smul.u32 4, %s21
          %s238 = smul.addr %s237, 2
          %s239 = sadd.s32 %s20, %s238
          %s240 = smul.addr %s239, 8
          %s241 = scalar_lea.vmem %s0, %s240
          // Predicated region
          $region21: #{sharpen_sigmoid_nll_f_dv.1} parent=19 // pred_check
            _
          $region22: #{sharpen_sigmoid_nll_f_dv.1} parent=19 // pred_check_branch
            %243 = sbr.rel (0) target = $region24
          $region23: #{sharpen_sigmoid_nll_f_dv.1} parent=19 // pred_region
            // Predicated region
            $region25: #{sharpen_sigmoid_nll_f_dv.1} parent=23 // pred_check
              _
            $region26: #{sharpen_sigmoid_nll_f_dv.1} parent=23 // pred_check_branch
              %245 = sbr.rel (0) target = $region28
            $region27: #{sharpen_sigmoid_nll_f_dv.1} parent=23 // pred_region
              // Predicated region
              $region40: #{sharpen_sigmoid_nll_f_dv.1} parent=27 // pred_check
                _
              $region41: #{sharpen_sigmoid_nll_f_dv.1} parent=27 // pred_check_branch
                %266 = sbr.rel (0) target = $region43
              $region42: #{sharpen_sigmoid_nll_f_dv.1} parent=27 // pred_region
                loop: start=0, step=1, limit=1
                $region44: #{sharpen_sigmoid_nll_f_dv.1} parent=42 // loop_pre_header
                  _
                $region45: #{sharpen_sigmoid_nll_f_dv.1} parent=42 // loop_header
                  %s268 = sphi 0, %s272
                  %p269 = scmp.ge.s32.totalorder %s268, 1
                  %s273 = sphi %s241, %s241
                  %s274 = sphi %s236, %s236
                $region46: #{sharpen_sigmoid_nll_f_dv.1} parent=42 // loop_header_branch
                  %271 = sbr.rel (%p269) target = $region50
                $region47: #{sharpen_sigmoid_nll_f_dv.1} parent=42 // loop_body
                  %v275 = vld [vmem:[%s273] sm:$0xff]
                  %276 = vst [vmem:[%s274] sm:$0xff] %v275
                  %v277 = vld [vmem:[%s273 + $0x10] sm:$0xff]
                  %278 = vst [vmem:[%s274 + $0x8] sm:$0xff] %v277
                  %v279 = vld [vmem:[%s273 + $0x20] sm:$0xff]
                  %280 = vst [vmem:[%s274 + $0x10] sm:$0xff] %v279
                  %v281 = vld [vmem:[%s273 + $0x30] sm:$0xff]
                  %282 = vst [vmem:[%s274 + $0x18] sm:$0xff] %v281
                $region48: #{sharpen_sigmoid_nll_f_dv.1} parent=42 // loop_footer
                  %s272 = sadd.s32 1, %s268
                $region49: #{sharpen_sigmoid_nll_f_dv.1} parent=42 // loop_footer_branch
                  %267 = sbr.rel target = $region45
                $region50: #{sharpen_sigmoid_nll_f_dv.1} parent=42 // loop_exit
                  _
              $region43: #{sharpen_sigmoid_nll_f_dv.1} parent=27 // pred_fallthru
                _
              // Predicated region
              $region51: #{sharpen_sigmoid_nll_f_dv.1} parent=27 // pred_check
                _
              $region52: #{sharpen_sigmoid_nll_f_dv.1} parent=27 // pred_check_branch
                %284 = sbr.rel target = $region54
              $region53: #{sharpen_sigmoid_nll_f_dv.1} parent=27 // pred_region
                _
              $region54: #{sharpen_sigmoid_nll_f_dv.1} parent=27 // pred_fallthru
                _
            $region28: #{sharpen_sigmoid_nll_f_dv.1} parent=23 // pred_fallthru
              _
            // Predicated region
            $region29: #{sharpen_sigmoid_nll_f_dv.1} parent=23 // pred_check
              _
            $region30: #{sharpen_sigmoid_nll_f_dv.1} parent=23 // pred_check_branch
              %247 = sbr.rel target = $region32
            $region31: #{sharpen_sigmoid_nll_f_dv.1} parent=23 // pred_region
              loop: start=0, step=1, limit=1
              $region33: #{sharpen_sigmoid_nll_f_dv.1} parent=31 // loop_pre_header
                _
              $region34: #{sharpen_sigmoid_nll_f_dv.1} parent=31 // loop_header
                %s250 = sphi 0, %s254
                %p251 = scmp.ge.s32.totalorder %s250, 1
                %s255 = sphi %s241, %s241
                %s256 = sphi %s236, %s236
              $region35: #{sharpen_sigmoid_nll_f_dv.1} parent=31 // loop_header_branch
                %253 = sbr.rel (%p251) target = $region39
              $region36: #{sharpen_sigmoid_nll_f_dv.1} parent=31 // loop_body
                %v257 = vld [vmem:[%s255] sm:$0xff]
                %258 = vst [vmem:[%s256] sm:$0xff] %v257
                %v259 = vld [vmem:[%s255 + $0x10] sm:$0xff]
                %260 = vst [vmem:[%s256 + $0x8] sm:$0xff] %v259
                %v261 = vld [vmem:[%s255 + $0x20] sm:$0xff]
                %262 = vst [vmem:[%s256 + $0x10] sm:$0xff] %v261
                %v263 = vld [vmem:[%s255 + $0x30] sm:$0xff]
                %264 = vst [vmem:[%s256 + $0x18] sm:$0xff] %v263
              $region37: #{sharpen_sigmoid_nll_f_dv.1} parent=31 // loop_footer
                %s254 = sadd.s32 1, %s250
              $region38: #{sharpen_sigmoid_nll_f_dv.1} parent=31 // loop_footer_branch
                %249 = sbr.rel target = $region34
              $region39: #{sharpen_sigmoid_nll_f_dv.1} parent=31 // loop_exit
                _
            $region32: #{sharpen_sigmoid_nll_f_dv.1} parent=23 // pred_fallthru
              _
          $region24: #{sharpen_sigmoid_nll_f_dv.1} parent=19 // pred_fallthru
            _
          %285 = vnop
        $region20: #{sharpen_sigmoid_nll_f_dv.1} parent=15 // pred_fallthru
          _
        // Predicated region
        $region55: #{sharpen_sigmoid_nll_f_dv.1} parent=15 // pred_check
          %p286 = pneg %p75
        $region56: #{sharpen_sigmoid_nll_f_dv.1} parent=15 // pred_check_branch
          %288 = sbr.rel (%p286) target = $region58
        $region57: #{sharpen_sigmoid_nll_f_dv.1} parent=15 // pred_region
          %p289 = scmp.lt.s32.totalorder %s21, 1
          %s290 = scalar_select %p289, %s21, 1
          %p291 = scmp.lt.s32.totalorder %s20, 1
          %s292 = scalar_select %p291, %s20, 1
          %s293 = smul.addr %s290, 2
          %s294 = sadd.s32 %s292, %s293
          %s295 = smul.addr %s294, 8
          %s296 = scalar_lea.vmem %s1, %s295
        $region58: #{sharpen_sigmoid_nll_f_dv.1} parent=15 // pred_fallthru
          _
        // Predicated region
        $region59: #{sharpen_sigmoid_nll_f_dv.1} parent=15 // pred_check
          %p297 = pneg %p101
        $region60: #{sharpen_sigmoid_nll_f_dv.1} parent=15 // pred_check_branch
          %299 = sbr.rel (%p297) target = $region62
        $region61: #{sharpen_sigmoid_nll_f_dv.1} parent=15 // pred_region
          %p300 = scmp.lt.s32.totalorder %s20, 1
          %s301 = scalar_select %p300, %s20, 1
          %s302 = scalar_lea.vmem %s2, %s301
        $region62: #{sharpen_sigmoid_nll_f_dv.1} parent=15 // pred_fallthru
          _
        // Predicated region
        $region63: #{sharpen_sigmoid_nll_f_dv.1} parent=15 // pred_check
          %p303 = pneg %p127
        $region64: #{sharpen_sigmoid_nll_f_dv.1} parent=15 // pred_check_branch
          %305 = sbr.rel (%p303) target = $region66
        $region65: #{sharpen_sigmoid_nll_f_dv.1} parent=15 // pred_region
          %p306 = scmp.lt.s32.totalorder %s20, 1
          %s307 = scalar_select %p306, %s20, 1
          %s308 = scalar_lea.vmem %s3, %s307
        $region66: #{sharpen_sigmoid_nll_f_dv.1} parent=15 // pred_fallthru
          _
        // Predicated region
        $region67: #{sharpen_sigmoid_nll_f_dv.1} parent=15 // pred_check
          %p309 = pneg %p153
        $region68: #{sharpen_sigmoid_nll_f_dv.1} parent=15 // pred_check_branch
          %311 = sbr.rel (%p309) target = $region70
        $region69: #{sharpen_sigmoid_nll_f_dv.1} parent=15 // pred_region
          %s312 = smul.u32 16, %s20
          %p313 = scmp.lt.s32.totalorder %s312, 31
          %s314 = scalar_select %p313, %s312, 31
          %s315 = smul.addr %s314, 4
          %s316 = scalar_lea.vmem %s4, %s315
          %s317 = smul.u32 16, %s20
        $region70: #{sharpen_sigmoid_nll_f_dv.1} parent=15 // pred_fallthru
          _
      $region16: #{sharpen_sigmoid_nll_f_dv.1} parent=5 // pred_fallthru
        _
      %p318 = scmp.le.s32.totalorder 1, %s13
      %p319 = scmp.lt.s32.totalorder %s13, 5
      %p320 = pnand %p318, %p319
      %p321 = pneg %p320
      // Predicated region
      $region71: #{sharpen_sigmoid_nll_f_dv.1} parent=5 // pred_check
        _
      $region72: #{sharpen_sigmoid_nll_f_dv.1} parent=5 // pred_check_branch
        %323 = sbr.rel (%p320) target = $region74
      $region73: #{sharpen_sigmoid_nll_f_dv.1} parent=5 // pred_region
        %s324 = ssub.s32 %s13, 1
        %s325 = sand.u32 %s40, 1
        %s326 = sand.u32 %s40, 1
        %s327 = smul.addr %s326, 32
        %s328 = scalar_lea.vmem [#allocation4], %s327
        // Predicated region
        $region75: #{sharpen_sigmoid_nll_f_dv.1} parent=73 // pred_check
          %p329 = pneg %p53
        $region76: #{sharpen_sigmoid_nll_f_dv.1} parent=73 // pred_check_branch
          %331 = sbr.rel (%p329) target = $region78
        $region77: #{sharpen_sigmoid_nll_f_dv.1} parent=73 // pred_region
          _
        $region78: #{sharpen_sigmoid_nll_f_dv.1} parent=73 // pred_fallthru
          _
        %s332 = sand.u32 %s40, 1
        %s333 = sand.u32 %s40, 1
        %s334 = smul.addr %s333, 32
        %s335 = scalar_lea.vmem [#allocation4], %s334
        %p336 = pneg %p53
        %p337 = pneg %p50
        %p338 = scmp.lt.s32.totalorder %s23, 1
        %s339 = scalar_select %p338, %s23, 1
        %p340 = scmp.lt.s32.totalorder %s22, 1
        %s341 = scalar_select %p340, %s22, 1
        %s342 = smul.addr %s339, 2
        %s343 = sadd.s32 %s341, %s342
        %s344 = smul.addr %s343, 8
        %s345 = scalar_lea.vmem %s1, %s344
        %p346 = pneg %p81
        %p347 = pneg %p78
        %p348 = scmp.lt.s32.totalorder %s22, 1
        %s349 = scalar_select %p348, %s22, 1
        %s350 = scalar_lea.vmem %s2, %s349
        %p351 = pneg %p107
        %p352 = pneg %p104
        %p353 = scmp.lt.s32.totalorder %s22, 1
        %s354 = scalar_select %p353, %s22, 1
        %s355 = scalar_lea.vmem %s3, %s354
        %p356 = pneg %p133
        %p357 = pneg %p130
        %s358 = smul.u32 16, %s22
        %p359 = scmp.lt.s32.totalorder %s358, 31
        %s360 = scalar_select %p359, %s358, 31
        %s361 = smul.addr %s360, 4
        %s362 = scalar_lea.vmem %s4, %s361
        %p363 = pneg %p159
        %p364 = pneg %p156
        %p365 = pneg %p185
        %p366 = pneg %p182
        %p367 = scmp.lt.s32.totalorder %s22, 1
        %s368 = scalar_select %p367, %s22, 1
        %s369 = smul.addr %s368, 8
        %s370 = scalar_lea.vmem %s5, %s369
        %p371 = pneg %p211
        %p372 = pneg %p208
        %p373 = scmp.lt.s32.totalorder %s22, 1
        %s374 = scalar_select %p373, %s22, 1
        %s375 = smul.addr %s374, 2
        %s376 = scalar_lea.vmem %s6, %s375
        %s377 = smul.u32 4, %s23
        %p378 = scmp.lt.s32.totalorder %s23, 1
        %s379 = scalar_select %p378, %s23, 1
        %p380 = scmp.lt.s32.totalorder %s22, 1
        %s381 = scalar_select %p380, %s22, 1
        %s382 = smul.addr %s379, 2
        %s383 = sadd.s32 %s381, %s382
        %s384 = smul.addr %s383, 8
        %s385 = scalar_lea.vmem %s1, %s384
        %p386 = scmp.lt.s32.totalorder %s22, 1
        %s387 = scalar_select %p386, %s22, 1
        %s388 = scalar_lea.vmem %s2, %s387
        %p389 = scmp.lt.s32.totalorder %s22, 1
        %s390 = scalar_select %p389, %s22, 1
        %s391 = scalar_lea.vmem %s3, %s390
        %s392 = smul.u32 16, %s22
        %p393 = scmp.lt.s32.totalorder %s392, 31
        %s394 = scalar_select %p393, %s392, 31
        %s395 = smul.addr %s394, 4
        %s396 = scalar_lea.vmem %s4, %s395
        %s397 = smul.u32 16, %s22
        %p398 = scmp.lt.s32.totalorder %s22, 1
        %s399 = scalar_select %p398, %s22, 1
        %s400 = smul.addr %s399, 8
        %s401 = scalar_lea.vmem %s5, %s400
        %p402 = scmp.lt.s32.totalorder %s22, 1
        %s403 = scalar_select %p402, %s22, 1
        %s404 = smul.addr %s403, 2
        %s405 = scalar_lea.vmem %s6, %s404
        %p406 = scmp.eq.s32.totalorder %s23, 0
        // Predicated region
        $region79: #{sharpen_sigmoid_nll_f_dv.1} parent=73 // pred_check
          %p407 = pneg %p406
        $region80: #{sharpen_sigmoid_nll_f_dv.1} parent=73 // pred_check_branch
          %409 = sbr.rel (%p407) target = $region82
        $region81: #{sharpen_sigmoid_nll_f_dv.1} parent=73 // pred_region
          %410 = vst [vmem:[#allocation2] sm:$0x1] 0.0
          %411 = vst [vmem:[#allocation3] sm:$0x3] 0.0
        $region82: #{sharpen_sigmoid_nll_f_dv.1} parent=73 // pred_fallthru
          _
        %v412 = vld [vmem:[%s328] sm:$0xff]
        %v413 = vld [vmem:[%s328 + $0x8] sm:$0xff]
        %v414 = vld [vmem:[%s328 + $0x10] sm:$0xff]
        %v415 = vld [vmem:[%s328 + $0x18] sm:$0xff]
        %v416 = vld [vmem:[%s385] sm:$0xff]
        %v417 = vunpack.c.0.s8 %v416
        %v418 = vunpack.c.1.s8 %v416
        %v419 = vunpack.c.2.s8 %v416
        %v420 = vunpack.c.3.s8 %v416
        %v421 = vcvt.s32.f32 %v417
        %v422 = vcvt.s32.f32 %v418
        %v423 = vcvt.s32.f32 %v419
        %v424 = vcvt.s32.f32 %v420
        %v425 = vld [vmem:[%s388] sm:$0x1]
        %v427 = vlaneseq
        %v428 = vshrl.u32 %v427, 7
        %v429 = vsub.s32 0, %v428
        %v430 = vrot.slane %v425, %v429
        %v432 = vmul.f32 %v412, %v430
        %v433 = vmul.f32 %v413, %v430
        %v434 = vmul.f32 %v414, %v430
        %v435 = vmul.f32 %v415, %v430
        %v436 = vld [vmem:[%s391] sm:$0x1]
        %v438 = vlaneseq
        %v439 = vshrl.u32 %v438, 7
        %v440 = vsub.s32 0, %v439
        %v441 = vrot.slane %v436, %v440
        %v443 = vadd.f32 %v432, %v441
        %v444 = vadd.f32 %v433, %v441
        %v445 = vadd.f32 %v434, %v441
        %v446 = vadd.f32 %v435, %v441
        %v447 = vand.u32 2147483647, %v443
        %v448 = vand.u32 2147483647, %v444
        %v449 = vand.u32 2147483647, %v445
        %v450 = vand.u32 2147483647, %v446
        %v451 = vsub.f32 0.0, %v447
        %v452 = vsub.f32 0.0, %v448
        %v453 = vsub.f32 0.0, %v449
        %v454 = vsub.f32 0.0, %v450
        %v455 = vmul.f32 %v451, 1.442695
        %v456 = vpow.pop %v455
        %v457 = vmul.f32 %v452, 1.442695
        %v458 = vpow.pop %v457
        %v459 = vmul.f32 %v453, 1.442695
        %v460 = vpow.pop %v459
        %v461 = vmul.f32 %v454, 1.442695
        %v462 = vpow.pop %v461
        %v463 = vmax.f32 %v443, 0.0
        %v464 = vmax.f32 %v444, 0.0
        %v465 = vmax.f32 %v445, 0.0
        %v466 = vmax.f32 %v446, 0.0
        %v467 = vmul.f32 %v443, %v421
        %v468 = vmul.f32 %v444, %v422
        %v469 = vmul.f32 %v445, %v423
        %v470 = vmul.f32 %v446, %v424
        %v471 = vsub.f32 %v463, %v467
        %v472 = vsub.f32 %v464, %v468
        %v473 = vsub.f32 %v465, %v469
        %v474 = vsub.f32 %v466, %v470
        %v475 = vadd.f32 %v456, 1.0
        %v476 = vlog2.pop %v475
        %v477 = vmul.f32 %v476, 0.6931472
        %v478 = vmul.f32 -0.5, %v456
        %v479 = vadd.f32 %v478, 1.0
        %v480 = vmul.f32 %v479, %v456
        %v481 = vand.u32 2147483647, %v456
        %vm482 = vcmp.lt.f32.partialorder %v481, 0.0004427343
        %v483 = vsel %vm482, %v480, %v477
        %v484 = vadd.f32 %v458, 1.0
        %v485 = vlog2.pop %v484
        %v486 = vmul.f32 %v485, 0.6931472
        %v487 = vmul.f32 -0.5, %v458
        %v488 = vadd.f32 %v487, 1.0
        %v489 = vmul.f32 %v488, %v458
        %v490 = vand.u32 2147483647, %v458
        %vm491 = vcmp.lt.f32.partialorder %v490, 0.0004427343
        %v492 = vsel %vm491, %v489, %v486
        %v493 = vadd.f32 %v460, 1.0
        %v494 = vlog2.pop %v493
        %v495 = vmul.f32 %v494, 0.6931472
        %v496 = vmul.f32 -0.5, %v460
        %v497 = vadd.f32 %v496, 1.0
        %v498 = vmul.f32 %v497, %v460
        %v499 = vand.u32 2147483647, %v460
        %vm500 = vcmp.lt.f32.partialorder %v499, 0.0004427343
        %v501 = vsel %vm500, %v498, %v495
        %v502 = vadd.f32 %v462, 1.0
        %v503 = vlog2.pop %v502
        %v504 = vmul.f32 %v503, 0.6931472
        %v505 = vmul.f32 -0.5, %v462
        %v506 = vadd.f32 %v505, 1.0
        %v507 = vmul.f32 %v506, %v462
        %v508 = vand.u32 2147483647, %v462
        %vm509 = vcmp.lt.f32.partialorder %v508, 0.0004427343
        %v510 = vsel %vm509, %v507, %v504
        %v511 = vadd.f32 %v471, %v483
        %v512 = vadd.f32 %v472, %v492
        %v513 = vadd.f32 %v473, %v501
        %v514 = vadd.f32 %v474, %v510
        %v515 = vadd.f32 %v456, 1.0
        %v516 = vadd.f32 %v458, 1.0
        %v517 = vadd.f32 %v460, 1.0
        %v518 = vadd.f32 %v462, 1.0
        %v519 = vrcp.pop %v515
        %v520 = vrcp.pop %v516
        %v521 = vrcp.pop %v517
        %v522 = vrcp.pop %v518
        %vm523 = vcmp.ge.f32.partialorder %v443, 0.0
        %vm524 = vcmp.ge.f32.partialorder %v444, 0.0
        %vm525 = vcmp.ge.f32.partialorder %v445, 0.0
        %vm526 = vcmp.ge.f32.partialorder %v446, 0.0
        %v527 = vmul.f32 %v456, %v519
        %v528 = vmul.f32 %v458, %v520
        %v529 = vmul.f32 %v460, %v521
        %v530 = vmul.f32 %v462, %v522
        %v531 = vsel %vm523, %v519, %v527
        %v532 = vsel %vm524, %v520, %v528
        %v533 = vsel %vm525, %v521, %v529
        %v534 = vsel %vm526, %v522, %v530
        %v535 = vsub.f32 %v531, %v421
        %v536 = vsub.f32 %v532, %v422
        %v537 = vsub.f32 %v533, %v423
        %v538 = vsub.f32 %v534, %v424
        %v539 = vlaneseq
        %v540 = vshrl.u32 %v539, 7
        %v541 = vadd.s32 %v540, 8
        %v542 = vadd.s32 %v540, 16
        %v543 = vadd.s32 %v540, 24
        %s544 = smul.u32 %s23, 32
        %v545 = vstv %s544
        %v546 = vadd.s32 %v540, %v545
        %v547 = vadd.s32 %v541, %v545
        %v548 = vadd.s32 %v542, %v545
        %v549 = vadd.s32 %v543, %v545
        %vm550 = vcmp.lt.s32.totalorder %v546, 40
        %vm551 = vcmp.lt.s32.totalorder %v547, 40
        %vm552 = vcmp.lt.s32.totalorder %v548, 40
        %vm553 = vcmp.lt.s32.totalorder %v549, 40
        %v554 = vsel %vm550, 1, 0
        %v555 = vsel %vm551, 1, 0
        %v556 = vsel %vm552, 1, 0
        %v557 = vsel %vm553, 1, 0
        %v558 = vcvt.s32.f32 %v554
        %v559 = vcvt.s32.f32 %v555
        %v560 = vcvt.s32.f32 %v556
        %v561 = vcvt.s32.f32 %v557
        %v562 = vmul.f32 %v511, %v558
        %v563 = vmul.f32 %v512, %v559
        %v564 = vmul.f32 %v513, %v560
        %v565 = vmul.f32 %v514, %v561
        %v566 = vmul.f32 %v535, %v558
        %v567 = vmul.f32 %v536, %v559
        %v568 = vmul.f32 %v537, %v560
        %v569 = vmul.f32 %v538, %v561
        %v570 = vld [vmem:[#allocation2] sm:$0x1]
        %v571 = vadd.f32 %v562, %v563
        %v572 = vadd.f32 %v571, %v564
        %v573 = vadd.f32 %v572, %v565
        %v574 = vrot.slane %v573, 4
        %v575 = vadd.f32 %v573, %v574
        %v576 = vrot.slane %v575, 2
        %v577 = vadd.f32 %v575, %v576
        %v578 = vrot.slane %v577, 1
        %v579 = vadd.f32 %v577, %v578
        %v580 = vadd.f32 %v570, %v579
        %581 = vst [vmem:[#allocation2] sm:$0x1] %v580
        %v582 = vld [vmem:[#allocation3] sm:$0x1]
        %v583 = vmul.f32 %v566, %v412
        %v584 = vmul.f32 %v567, %v413
        %v585 = vmul.f32 %v568, %v414
        %v586 = vmul.f32 %v569, %v415
        %v587 = vadd.f32 %v583, %v584
        %v588 = vadd.f32 %v587, %v585
        %v589 = vadd.f32 %v588, %v586
        %v590 = vrot.slane %v589, 4
        %v591 = vadd.f32 %v589, %v590
        %v592 = vrot.slane %v591, 2
        %v593 = vadd.f32 %v591, %v592
        %v594 = vrot.slane %v593, 1
        %v595 = vadd.f32 %v593, %v594
        %v596 = vadd.f32 %v582, %v595
        %597 = vst [vmem:[#allocation3] sm:$0x1] %v596
        %v598 = vld [vmem:[#allocation3 + $0x1] sm:$0x1]
        %v599 = vadd.f32 %v566, %v567
        %v600 = vadd.f32 %v599, %v568
        %v601 = vadd.f32 %v600, %v569
        %v602 = vrot.slane %v601, 4
        %v603 = vadd.f32 %v601, %v602
        %v604 = vrot.slane %v603, 2
        %v605 = vadd.f32 %v603, %v604
        %v606 = vrot.slane %v605, 1
        %v607 = vadd.f32 %v605, %v606
        %v608 = vadd.f32 %v598, %v607
        %609 = vst [vmem:[#allocation3 + $0x1] sm:$0x1] %v608
        %p610 = scmp.eq.s32.totalorder %s23, 1
        // Predicated region
        $region83: #{sharpen_sigmoid_nll_f_dv.1} parent=73 // pred_check
          %p611 = pneg %p610
        $region84: #{sharpen_sigmoid_nll_f_dv.1} parent=73 // pred_check_branch
          %613 = sbr.rel (%p611) target = $region86
        $region85: #{sharpen_sigmoid_nll_f_dv.1} parent=73 // pred_region
          %v614 = vld [vmem:[%s396] sm:$0xf]
          %v615 = vld [vmem:[%s396 + $0x4] sm:$0xf]
          %v616 = vld [vmem:[%s396 + $0x8] sm:$0xf]
          %v617 = vld [vmem:[%s396 + $0xc] sm:$0xf]
          %v618 = vld [vmem:[%s396 + $0x10] sm:$0xf]
          %v619 = vld [vmem:[%s396 + $0x14] sm:$0xf]
          %v620 = vld [vmem:[%s396 + $0x18] sm:$0xf]
          %v621 = vld [vmem:[%s396 + $0x1c] sm:$0xf]
          %v622 = vld [vmem:[%s396 + $0x20] sm:$0xf]
          %v623 = vld [vmem:[%s396 + $0x24] sm:$0xf]
          %v624 = vld [vmem:[%s396 + $0x28] sm:$0xf]
          %v625 = vld [vmem:[%s396 + $0x2c] sm:$0xf]
          %v626 = vld [vmem:[%s396 + $0x30] sm:$0xf]
          %v627 = vld [vmem:[%s396 + $0x34] sm:$0xf]
          %v628 = vld [vmem:[%s396 + $0x38] sm:$0xf]
          %v629 = vld [vmem:[%s396 + $0x3c] sm:$0xf]
          %v630 = vunpack.c.l.bf16 %v614
          %v631 = vunpack.c.l.bf16 %v615
          %v632 = vunpack.c.l.bf16 %v616
          %v633 = vunpack.c.l.bf16 %v617
          %v634 = vunpack.c.l.bf16 %v618
          %v635 = vunpack.c.l.bf16 %v619
          %v636 = vunpack.c.l.bf16 %v620
          %v637 = vunpack.c.l.bf16 %v621
          %v638 = vunpack.c.l.bf16 %v622
          %v639 = vunpack.c.l.bf16 %v623
          %v640 = vunpack.c.l.bf16 %v624
          %v641 = vunpack.c.l.bf16 %v625
          %v642 = vunpack.c.l.bf16 %v626
          %v643 = vunpack.c.l.bf16 %v627
          %v644 = vunpack.c.l.bf16 %v628
          %v645 = vunpack.c.l.bf16 %v629
          %v646 = vld [vmem:[#allocation3] sm:$0x3]
          %647 = vmatprep.subr.mxu0 0.0
          %648 = vmatpush1.msra.mxu0 %v630
          %649 = vmatprep.subr.mxu0 0.0
          %650 = vmatpush1.msra.mxu0 %v631
          %651 = vmatprep.subr.mxu0 0.0
          %652 = vmatpush1.msra.mxu0 %v632
          %653 = vmatprep.subr.mxu0 0.0
          %654 = vmatpush1.msra.mxu0 %v633
          %655 = vmatprep.subr.mxu0 0.0
          %656 = vmatpush1.msra.mxu0 %v634
          %657 = vmatprep.subr.mxu0 0.0
          %658 = vmatpush1.msra.mxu0 %v635
          %659 = vmatprep.subr.mxu0 0.0
          %660 = vmatpush1.msra.mxu0 %v636
          %661 = vmatprep.subr.mxu0 0.0
          %662 = vmatpush1.msra.mxu0 %v637
          %663 = vmatprep.subr.mxu0 0.0
          %664 = vmatpush1.msra.mxu0 %v638
          %665 = vmatprep.subr.mxu0 0.0
          %666 = vmatpush1.msra.mxu0 %v639
          %667 = vmatprep.subr.mxu0 0.0
          %668 = vmatpush1.msra.mxu0 %v640
          %669 = vmatprep.subr.mxu0 0.0
          %670 = vmatpush1.msra.mxu0 %v641
          %671 = vmatprep.subr.mxu0 0.0
          %672 = vmatpush1.msra.mxu0 %v642
          %673 = vmatprep.subr.mxu0 0.0
          %674 = vmatpush1.msra.mxu0 %v643
          %675 = vmatprep.subr.mxu0 0.0
          %676 = vmatpush1.msra.mxu0 %v644
          %677 = vmatprep.subr.mxu0 0.0
          %678 = vmatpush1.msra.mxu0 %v645
          %679 = vmatprep.subr.mxu0 0.0
          %680 = vmatpush1.msra.mxu0 0.0
          %681 = vmatprep.subr.mxu0 0.0
          %682 = vmatpush1.msra.mxu0 0.0
          %683 = vmatprep.subr.mxu0 0.0
          %684 = vmatpush1.msra.mxu0 0.0
          %685 = vmatprep.subr.mxu0 0.0
          %686 = vmatpush1.msra.mxu0 0.0
          %687 = vmatprep.subr.mxu0 0.0
          %688 = vmatpush1.msra.mxu0 0.0
          %689 = vmatprep.subr.mxu0 0.0
          %690 = vmatpush1.msra.mxu0 0.0
          %691 = vmatprep.subr.mxu0 0.0
          %692 = vmatpush1.msra.mxu0 0.0
          %693 = vmatprep.subr.mxu0 0.0
          %694 = vmatpush1.msra.mxu0 0.0
          %695 = vmatprep.subr.mxu0 0.0
          %696 = vmatpush1.msra.mxu0 0.0
          %697 = vmatprep.subr.mxu0 0.0
          %698 = vmatpush1.msra.mxu0 0.0
          %699 = vmatprep.subr.mxu0 0.0
          %700 = vmatpush1.msra.mxu0 0.0
          %701 = vmatprep.subr.mxu0 0.0
          %702 = vmatpush1.msra.mxu0 0.0
          %703 = vmatprep.subr.mxu0 0.0
          %704 = vmatpush1.msra.mxu0 0.0
          %705 = vmatprep.subr.mxu0 0.0
          %706 = vmatpush1.msra.mxu0 0.0
          %707 = vmatprep.subr.mxu0 0.0
          %708 = vmatpush1.msra.mxu0 0.0
          %709 = vmatprep.subr.mxu0 0.0
          %710 = vmatpush1.msra.mxu0 0.0
          %711 = vmatprep.mubr.f32.mxu0 0.0
          %712 = vmatmul.mubr.f32.gmra.mrb[0].mxu0 %v646
          %v713 = vpop.f32.mrb[0].mxu0
          %v714 = vadd.f32 0.0, %v713
          %v715 = vpop.f32.mrb[0].mxu0
          %716 = vdwg.mxu0
          %717 = vst [vmem:[%s405] sm:$0x3] %v714
          %v718 = vld [vmem:[#allocation2] sm:$0x1]
          %vm719 = vcmask 1040384
          %v720 = vsel %vm719, %v718, 0.0
          %721 = vadd.xlane.f32.xlu0 %v720
          %v722 = vpop.xlane.xlu0 %721
          %v723 = vrot.slane %v722, 4
          %v724 = vadd.f32 %v722, %v723
          %v725 = vrot.slane %v724, 2
          %v726 = vadd.f32 %v724, %v725
          %v727 = vrot.slane %v726, 1
          %v728 = vadd.f32 %v726, %v727
          %s729 = vtos %v728
          %v730 = vstv %s729
          %731 = vst [vmem:[%s401] sm:$0xff] %v730
        $region86: #{sharpen_sigmoid_nll_f_dv.1} parent=73 // pred_fallthru
          _
        %p732 = scmp.lt.s32.totalorder %s22, 1
        %s733 = scalar_select %p732, %s22, 1
        %s734 = smul.addr %s733, 8
        %s735 = scalar_lea.vmem %s5, %s734
        %p736 = scmp.lt.s32.totalorder %s22, 1
        %s737 = scalar_select %p736, %s22, 1
        %s738 = smul.addr %s737, 2
        %s739 = scalar_lea.vmem %s6, %s738
        // Predicated region
        $region87: #{sharpen_sigmoid_nll_f_dv.1} parent=73 // pred_check
          %p740 = pneg %p182
        $region88: #{sharpen_sigmoid_nll_f_dv.1} parent=73 // pred_check_branch
          %742 = sbr.rel (%p740) target = $region90
        $region89: #{sharpen_sigmoid_nll_f_dv.1} parent=73 // pred_region
          _
        $region90: #{sharpen_sigmoid_nll_f_dv.1} parent=73 // pred_fallthru
          _
        // Predicated region
        $region91: #{sharpen_sigmoid_nll_f_dv.1} parent=73 // pred_check
          %p743 = pneg %p208
        $region92: #{sharpen_sigmoid_nll_f_dv.1} parent=73 // pred_check_branch
          %745 = sbr.rel (%p743) target = $region94
        $region93: #{sharpen_sigmoid_nll_f_dv.1} parent=73 // pred_region
          _
        $region94: #{sharpen_sigmoid_nll_f_dv.1} parent=73 // pred_fallthru
          _
      $region74: #{sharpen_sigmoid_nll_f_dv.1} parent=5 // pred_fallthru
        _
      %p746 = scmp.le.s32.totalorder 2, %s13
      // Predicated region
      $region95: #{sharpen_sigmoid_nll_f_dv.1} parent=5 // pred_check
        %p747 = pneg %p746
      $region96: #{sharpen_sigmoid_nll_f_dv.1} parent=5 // pred_check_branch
        %749 = sbr.rel (%p747) target = $region98
      $region97: #{sharpen_sigmoid_nll_f_dv.1} parent=5 // pred_region
        %s750 = ssub.s32 %s13, 2
        // Predicated region
        $region99: #{sharpen_sigmoid_nll_f_dv.1} parent=97 // pred_check
          %p751 = pneg %p188
        $region100: #{sharpen_sigmoid_nll_f_dv.1} parent=97 // pred_check_branch
          %753 = sbr.rel (%p751) target = $region102
        $region101: #{sharpen_sigmoid_nll_f_dv.1} parent=97 // pred_region
          %p754 = scmp.lt.s32.totalorder %s24, 1
          %s755 = scalar_select %p754, %s24, 1
          %s756 = smul.addr %s755, 8
          %s757 = scalar_lea.vmem %s5, %s756
        $region102: #{sharpen_sigmoid_nll_f_dv.1} parent=97 // pred_fallthru
          _
        // Predicated region
        $region103: #{sharpen_sigmoid_nll_f_dv.1} parent=97 // pred_check
          %p758 = pneg %p214
        $region104: #{sharpen_sigmoid_nll_f_dv.1} parent=97 // pred_check_branch
          %760 = sbr.rel (%p758) target = $region106
        $region105: #{sharpen_sigmoid_nll_f_dv.1} parent=97 // pred_region
          %p761 = scmp.lt.s32.totalorder %s24, 1
          %s762 = scalar_select %p761, %s24, 1
          %s763 = smul.addr %s762, 2
          %s764 = scalar_lea.vmem %s6, %s763
        $region106: #{sharpen_sigmoid_nll_f_dv.1} parent=97 // pred_fallthru
          _
      $region98: #{sharpen_sigmoid_nll_f_dv.1} parent=5 // pred_fallthru
        _
    $region6: #{sharpen_sigmoid_nll_f_dv.1} parent=1 // loop_footer
      %s17 = sadd.s32 1, %s13
    $region7: #{sharpen_sigmoid_nll_f_dv.1} parent=1 // loop_footer_branch
      %12 = sbr.rel target = $region3
    $region8: #{sharpen_sigmoid_nll_f_dv.1} parent=1 // loop_exit
      _

</llo_original>
